<compile_context>
chip_gen: v7x
topology: tpu7x:2x2x1
jax: 0.10.0
libtpu: 0.0.40
codegen_flags: <defaults>
</compile_context>

<pallas_src>
import jax
import jax.numpy as jnp
from jax.experimental import pallas as pl
from jax.experimental.pallas import tpu as pltpu


# --------------------------------------------------------------------------
# Kernel: one x tile, two tiny resident weight/bias pairs, two outputs.
#   x_ref:    (N_in, T)     lane-dense tile (T = feature tile or folded lanes)
#   w_sp_ref: (N_sp, N_in)  spatial Conv1d(k=1) weight      b_sp_ref: (N_sp, 1)
#   w_sc_ref: (N_sc, N_in)  spectral Conv1d(k=1) weight     b_sc_ref: (N_sc, 1)
#   sp_ref:   (N_sp, T)     spatial output tile
#   sc_ref:   (N_sc, T)     spectral output tile
# --------------------------------------------------------------------------
def _fusion_kernel(x_ref, w_sp_ref, b_sp_ref, w_sc_ref, b_sc_ref,
                   sp_ref, sc_ref):
    x = x_ref[...]
    sp = jnp.dot(w_sp_ref[...], x, preferred_element_type=jnp.float32)
    sp = sp + b_sp_ref[...].astype(jnp.float32)
    sp_ref[...] = sp.astype(sp_ref.dtype)

    sc = jnp.dot(w_sc_ref[...], x, preferred_element_type=jnp.float32)
    sc = sc + b_sc_ref[...].astype(jnp.float32)
    sc_ref[...] = sc.astype(sc_ref.dtype)


def _pick_feature_tile(B, F):
    """Largest 128-multiple feature tile (cap 16384 lanes), keeping >= 2 total
    grid steps when possible so the v7x megacore can split the work."""
    tf = min((F // 128) * 128, 16384)
    if B == 1 and tf >= F:
        n_groups = F // 128
        if n_groups >= 2:
            tf = ((n_groups + 1) // 2) * 128   # ~2 feature blocks
    return max(tf, 128)


# --------------------------------------------------------------------------
# Main path: F >= 128.  Grid (B, F-tiles); no wrapper layout ops at all.
# --------------------------------------------------------------------------
def _fusion_pallas_fgrid(x, w_sp, b_sp, w_sc, b_sc):
    B, N_in, F = x.shape
    N_sp, N_sc = w_sp.shape[0], w_sc.shape[0]
    tf = _pick_feature_tile(B, F)
    grid = (B, pl.cdiv(F, tf))

    itemsize = jnp.dtype(x.dtype).itemsize
    cost = pl.CostEstimate(
        flops=2 * (N_sp + N_sc) * N_in * B * F,
        transcendentals=0,
        bytes_accessed=(B * N_in * F + (N_sp + N_sc) * (N_in + 1)
                        + B * (N_sp + N_sc) * F) * itemsize,
    )

    sp, sc = pl.pallas_call(
        _fusion_kernel,
        out_shape=(jax.ShapeDtypeStruct((B, N_sp, F), x.dtype),
                   jax.ShapeDtypeStruct((B, N_sc, F), x.dtype)),
        grid_spec=pltpu.PrefetchScalarGridSpec(
            num_scalar_prefetch=0,
            grid=grid,
            in_specs=[
                pl.BlockSpec((None, N_in, tf), lambda b, f: (b, 0, f)),
                pl.BlockSpec((N_sp, N_in), lambda b, f: (0, 0)),
                pl.BlockSpec((N_sp, 1), lambda b, f: (0, 0)),
                pl.BlockSpec((N_sc, N_in), lambda b, f: (0, 0)),
                pl.BlockSpec((N_sc, 1), lambda b, f: (0, 0)),
            ],
            out_specs=[
                pl.BlockSpec((None, N_sp, tf), lambda b, f: (b, 0, f)),
                pl.BlockSpec((None, N_sc, tf), lambda b, f: (b, 0, f)),
            ],
        ),
        compiler_params=pltpu.CompilerParams(
            dimension_semantics=("parallel", "parallel")),
        cost_estimate=cost,
    )(x, w_sp, b_sp, w_sc, b_sc)
    return sp, sc


# --------------------------------------------------------------------------
# Fallback path: F < 128.  Fold batch into lanes, pad to a 128 multiple so
# every store is an unmasked full-width vst.
# --------------------------------------------------------------------------
def _fusion_pallas_lanefold(x, w_sp, b_sp, w_sc, b_sc):
    B, N_in, F = x.shape
    N_sp, N_sc = w_sp.shape[0], w_sc.shape[0]
    L = B * F

    x2 = jnp.transpose(x, (1, 0, 2)).reshape(N_in, L)   # (N_in, B*F)
    Lp = max(128, ((L + 127) // 128) * 128)
    if Lp != L:
        x2 = jnp.pad(x2, ((0, 0), (0, Lp - L)))

    tl = min(Lp, 16384)
    if Lp // tl < 2 and Lp >= 256:                       # v7x: aim for >=2 steps
        tl = ((Lp // 2 + 127) // 128) * 128
    grid = (pl.cdiv(Lp, tl),)

    itemsize = jnp.dtype(x.dtype).itemsize
    cost = pl.CostEstimate(
        flops=2 * (N_sp + N_sc) * N_in * Lp,
        transcendentals=0,
        bytes_accessed=(N_in * Lp + (N_sp + N_sc) * (N_in + 1)
                        + (N_sp + N_sc) * Lp) * itemsize,
    )

    sp2, sc2 = pl.pallas_call(
        _fusion_kernel,
        out_shape=(jax.ShapeDtypeStruct((N_sp, Lp), x.dtype),
                   jax.ShapeDtypeStruct((N_sc, Lp), x.dtype)),
        grid_spec=pltpu.PrefetchScalarGridSpec(
            num_scalar_prefetch=0,
            grid=grid,
            in_specs=[
                pl.BlockSpec((N_in, tl), lambda l: (0, l)),
                pl.BlockSpec((N_sp, N_in), lambda l: (0, 0)),
                pl.BlockSpec((N_sp, 1), lambda l: (0, 0)),
                pl.BlockSpec((N_sc, N_in), lambda l: (0, 0)),
                pl.BlockSpec((N_sc, 1), lambda l: (0, 0)),
            ],
            out_specs=[
                pl.BlockSpec((N_sp, tl), lambda l: (0, l)),
                pl.BlockSpec((N_sc, tl), lambda l: (0, l)),
            ],
        ),
        compiler_params=pltpu.CompilerParams(
            dimension_semantics=("parallel",)),
        cost_estimate=cost,
    )(x2, w_sp, b_sp, w_sc, b_sc)

    sp = sp2[:, :L].reshape(N_sp, B, F).transpose(1, 0, 2)
    sc = sc2[:, :L].reshape(N_sc, B, F).transpose(1, 0, 2)
    return sp, sc


def _fusion_pallas(x, w_sp, b_sp, w_sc, b_sc):
    F = x.shape[2]
    if F >= 128:
        return _fusion_pallas_fgrid(x, w_sp, b_sp, w_sc, b_sc)
    return _fusion_pallas_lanefold(x, w_sp, b_sp, w_sc, b_sc)


# --------------------------------------------------------------------------
# Module port (forward only).
# --------------------------------------------------------------------------
class FeatureFusion:
    """JAX/Pallas port of the PyTorch FeatureFusion module (forward only)."""

    def __init__(self, img_size, spatial_patches, spatial_local_patches,
                 spectral_patches, register_tokens, key):
        self.img_size = img_size
        self.spatial_size = spatial_patches ** 2 + register_tokens + 1
        self.spectral_size = spectral_patches + register_tokens + 1
        self.spatial_local_size = spatial_local_patches ** 2 + register_tokens + 1

        def conv1d_params(k, out_ch, in_ch):
            # PyTorch default init: uniform(-1/sqrt(in_ch), 1/sqrt(in_ch))
            kw, kb = jax.random.split(k)
            bound = 1.0 / jnp.sqrt(jnp.float32(in_ch))
            w = jax.random.uniform(kw, (out_ch, in_ch), jnp.float32, -bound, bound)
            b = jax.random.uniform(kb, (out_ch, 1), jnp.float32, -bound, bound)
            return w, b

        ks = jax.random.split(key, 4)
        n_glob = self.spatial_size + self.spectral_size
        n_loc = self.spatial_local_size + self.spectral_size
        self.w_spatial_g, self.b_spatial_g = conv1d_params(ks[0], self.spatial_size, n_glob)
        self.w_spectral_g, self.b_spectral_g = conv1d_params(ks[1], self.spectral_size, n_glob)
        self.w_spatial_l, self.b_spatial_l = conv1d_params(ks[2], self.spatial_local_size, n_loc)
        self.w_spectral_l, self.b_spectral_l = conv1d_params(ks[3], self.spectral_size, n_loc)

    def __call__(self, x):
        B, N, F = x.shape
        # Same dispatch rule as the PyTorch reference (mis-routes only if the
        # global and local token counts coincide, as in the original module).
        if N == self.spatial_size + self.spectral_size:
            return _fusion_pallas(x, self.w_spatial_g, self.b_spatial_g,
                                  self.w_spectral_g, self.b_spectral_g)
        else:
            return _fusion_pallas(x, self.w_spatial_l, self.b_spatial_l,
                                  self.w_spectral_l, self.b_spectral_l)


def _reference(x, w_sp, b_sp, w_sc, b_sc):
    spatial = jnp.einsum("oc,bcf->bof", w_sp, x) + b_sp[None]
    spectral = jnp.einsum("oc,bcf->bof", w_sc, x) + b_sc[None]
    return spatial, spectral


if __name__ == "__main__":
    key = jax.random.PRNGKey(0)
    k_param, k1, k2, k3, k4 = jax.random.split(key, 5)

    # spatial_patches=3, spatial_local_patches=2, spectral_patches=5, register_tokens=2
    module = FeatureFusion(img_size=16, spatial_patches=3,
                           spatial_local_patches=2, spectral_patches=5,
                           register_tokens=2, key=k_param)
    # spatial_size=12, spectral_size=8, spatial_local_size=7
    n_glob = module.spatial_size + module.spectral_size        # 20
    n_loc = module.spatial_local_size + module.spectral_size   # 15
    B = 2

    def check(x, w_sp, b_sp, w_sc, b_sc):
        sp, sc = module(x)
        jax.block_until_ready((sp, sc))
        ref_sp, ref_sc = _reference(x, w_sp, b_sp, w_sc, b_sc)
        assert sp.shape == ref_sp.shape and sc.shape == ref_sc.shape
        assert jnp.allclose(sp, ref_sp, atol=1e-5)
        assert jnp.allclose(sc, ref_sc, atol=1e-5)

    # --- global path, small F (lane-fold fallback, padded to 128 lanes) ---
    x = jax.random.normal(k1, (B, n_glob, 32), jnp.float32)
    check(x, module.w_spatial_g, module.b_spatial_g,
          module.w_spectral_g, module.b_spectral_g)

    # --- local path, small F ---
    x = jax.random.normal(k2, (B, n_loc, 32), jnp.float32)
    check(x, module.w_spatial_l, module.b_spatial_l,
          module.w_spectral_l, module.b_spectral_l)

    # --- global path, F multiple of 128 (direct 2-D grid, no wrapper transposes) ---
    x = jax.random.normal(k3, (B, n_glob, 256), jnp.float32)
    check(x, module.w_spatial_g, module.b_spatial_g,
          module.w_spectral_g, module.b_spectral_g)

    # --- global path, ragged F (cdiv tiling, masked last block) ---
    x = jax.random.normal(k4, (B, n_glob, 192), jnp.float32)
    check(x, module.w_spatial_g, module.b_spatial_g,
          module.w_spectral_g, module.b_spectral_g)

    # TODO(synk): optional bf16-input variant (halves HBM read traffic on
    # v6e/v7x) left disabled to keep exact f32 parity with the reference.
    print("KERNEL_OK")
</pallas_src>

<mosaic_0001>
module attributes {stable_mosaic.version = 11 : i64} {
  func.func @_fusion_kernel(%arg0: i32, %arg1: memref<20x128xf32, #tpu.memory_space<vmem>>, %arg2: memref<12x20xf32, #tpu.memory_space<vmem>>, %arg3: memref<12x1xf32, #tpu.memory_space<vmem>>, %arg4: memref<8x20xf32, #tpu.memory_space<vmem>>, %arg5: memref<8x1xf32, #tpu.memory_space<vmem>>, %arg6: memref<12x128xf32, #tpu.memory_space<vmem>>, %arg7: memref<8x128xf32, #tpu.memory_space<vmem>>) attributes {dimension_semantics = [#tpu.dimension_semantics<parallel>], iteration_bounds = array<i64: 1>, scalar_prefetch = 0 : i64, scratch_operands = 0 : i64, tpu.core_type = #tpu.core_type<tc>, window_params = [{transform_indices = @transform_0, window_bounds = array<i64: 20, 128>}, {pipeline_mode = #tpu.pipeline_mode<synchronous>, transform_indices = @transform_1, window_bounds = array<i64: 12, 20>}, {pipeline_mode = #tpu.pipeline_mode<synchronous>, transform_indices = @transform_2, window_bounds = array<i64: 12, 1>}, {pipeline_mode = #tpu.pipeline_mode<synchronous>, transform_indices = @transform_3, window_bounds = array<i64: 8, 20>}, {pipeline_mode = #tpu.pipeline_mode<synchronous>, transform_indices = @transform_4, window_bounds = array<i64: 8, 1>}, {transform_indices = @transform_5, window_bounds = array<i64: 12, 128>}, {transform_indices = @transform_6, window_bounds = array<i64: 8, 128>}]} {
    %c0 = arith.constant 0 : index
    %c0_0 = arith.constant 0 : index
    %0 = vector.load %arg1[%c0, %c0_0] : memref<20x128xf32, #tpu.memory_space<vmem>>, vector<20x128xf32>
    %c0_1 = arith.constant 0 : index
    %c0_2 = arith.constant 0 : index
    %1 = vector.load %arg2[%c0_1, %c0_2] : memref<12x20xf32, #tpu.memory_space<vmem>>, vector<12x20xf32>
    %cst = arith.constant dense<0.000000e+00> : vector<12x128xf32>
    %2 = tpu.matmul %1, %0, %cst {dimension_numbers = #tpu.dot_dimension_numbers<[1], [0], [0], [1], [0, 0, 1, 1], [], []>} : vector<12x20xf32>, vector<20x128xf32>, vector<12x128xf32> -> vector<12x128xf32>
    %c0_3 = arith.constant 0 : index
    %c0_4 = arith.constant 0 : index
    %3 = vector.load %arg3[%c0_3, %c0_4] : memref<12x1xf32, #tpu.memory_space<vmem>>, vector<12x1xf32>
    %4 = vector.broadcast %3 : vector<12x1xf32> to vector<12x128xf32>
    %5 = arith.addf %2, %4 : vector<12x128xf32>
    %c0_5 = arith.constant 0 : index
    %c0_6 = arith.constant 0 : index
    %6 = vector.load %arg6[%c0_5, %c0_6] : memref<12x128xf32, #tpu.memory_space<vmem>>, vector<12x128xf32>
    tpu.vector_store %arg6[%c0_5, %c0_6], %5 {strides = array<i32>} : memref<12x128xf32, #tpu.memory_space<vmem>>, vector<12x128xf32>,
    %c0_7 = arith.constant 0 : index
    %c0_8 = arith.constant 0 : index
    %7 = vector.load %arg4[%c0_7, %c0_8] : memref<8x20xf32, #tpu.memory_space<vmem>>, vector<8x20xf32>
    %cst_9 = arith.constant dense<0.000000e+00> : vector<8x128xf32>
    %8 = tpu.matmul %7, %0, %cst_9 {dimension_numbers = #tpu.dot_dimension_numbers<[1], [0], [0], [1], [0, 0, 1, 1], [], []>} : vector<8x20xf32>, vector<20x128xf32>, vector<8x128xf32> -> vector<8x128xf32>
    %c0_10 = arith.constant 0 : index
    %c0_11 = arith.constant 0 : index
    %9 = vector.load %arg5[%c0_10, %c0_11] : memref<8x1xf32, #tpu.memory_space<vmem>>, vector<8x1xf32>
    %10 = vector.broadcast %9 : vector<8x1xf32> to vector<8x128xf32>
    %11 = arith.addf %8, %10 : vector<8x128xf32>
    %c0_12 = arith.constant 0 : index
    %c0_13 = arith.constant 0 : index
    %12 = vector.load %arg7[%c0_12, %c0_13] : memref<8x128xf32, #tpu.memory_space<vmem>>, vector<8x128xf32>
    tpu.vector_store %arg7[%c0_12, %c0_13], %11 {strides = array<i32>} : memref<8x128xf32, #tpu.memory_space<vmem>>, vector<8x128xf32>,
    return
  }
  func.func @transform_0(%arg0: i32) -> (i32, i32) {
    %c0_i32 = arith.constant 0 : i32
    %c0_i32_0 = arith.constant 0 : i32
    return %c0_i32, %arg0 : i32, i32
  }
  func.func @transform_1(%arg0: i32) -> (i32, i32) {
    %c0_i32 = arith.constant 0 : i32
    %c0_i32_0 = arith.constant 0 : i32
    %c0_i32_1 = arith.constant 0 : i32
    return %c0_i32, %c0_i32_0 : i32, i32
  }
  func.func @transform_2(%arg0: i32) -> (i32, i32) {
    %c0_i32 = arith.constant 0 : i32
    %c0_i32_0 = arith.constant 0 : i32
    %c0_i32_1 = arith.constant 0 : i32
    return %c0_i32, %c0_i32_0 : i32, i32
  }
  func.func @transform_3(%arg0: i32) -> (i32, i32) {
    %c0_i32 = arith.constant 0 : i32
    %c0_i32_0 = arith.constant 0 : i32
    %c0_i32_1 = arith.constant 0 : i32
    return %c0_i32, %c0_i32_0 : i32, i32
  }
  func.func @transform_4(%arg0: i32) -> (i32, i32) {
    %c0_i32 = arith.constant 0 : i32
    %c0_i32_0 = arith.constant 0 : i32
    %c0_i32_1 = arith.constant 0 : i32
    return %c0_i32, %c0_i32_0 : i32, i32
  }
  func.func @transform_5(%arg0: i32) -> (i32, i32) {
    %c0_i32 = arith.constant 0 : i32
    %c0_i32_0 = arith.constant 0 : i32
    return %c0_i32, %arg0 : i32, i32
  }
  func.func @transform_6(%arg0: i32) -> (i32, i32) {
    %c0_i32 = arith.constant 0 : i32
    %c0_i32_0 = arith.constant 0 : i32
    return %c0_i32, %arg0 : i32, i32
  }
}

</mosaic_0001>

<llo_original>
// kernel: tpu_custom_call.1
$region0: #{tpu_custom_call.1}
  #allocation0 [shape = 'u32[]', space=smem, size = 0x4, offset = 0x4, fixed_abs, tag = 'smem constant byte address 0x4 - core index']
  #allocation1 [shape = 'u32[144,128]{1,0:T(1,128)}', space=vmem, size = 0x12000, scoped, tag = 'internal scratch']
  %s0 = inlined_call_operand.vmem [shape: f32[20,128], index: 0, kind: input, shape index: {}]
  %s1 = inlined_call_operand.hbm [shape: f32[12,20], index: 1, kind: input, shape index: {}]
  %s2 = inlined_call_operand.vmem [shape: f32[12,1], index: 2, kind: input, shape index: {}]
  %s3 = inlined_call_operand.vmem [shape: f32[8,20], index: 3, kind: input, shape index: {}]
  %s4 = inlined_call_operand.vmem [shape: f32[8,1], index: 4, kind: input, shape index: {}]
  %s5 = inlined_call_operand.hbm [shape: f32[12,128], index: 5, kind: output, shape index: {0}]
  %s6 = inlined_call_operand.hbm [shape: f32[8,128], index: 6, kind: output, shape index: {1}]
  %7 = xla_tuple %s5, %s6
  %s8 = sld [smem:[#allocation0]]
  $region42: #{tpu_custom_call.1} parent=0
    _
  %s10 = ssub.s32 1, %s8
  %s11 = scalar_select 0, %s10, %s8
  $region1: #{tpu_custom_call.1} parent=0
    #allocation2 [shape = 'u8[8192]{0}', space=vmem, size = 0x2000, scoped, tag = 'input window, operand 1, single buffered']
    #allocation3 [shape = 's32[1]{0}', space=sflag, size = 0x4, scoped, tag = 'scoped memory for tpu_custom_call.1']
    #allocation4 [shape = 's32[1]{0}', space=sflag, size = 0x4, scoped, tag = 'scoped memory for tpu_custom_call.1']
    #allocation5 [shape = 'u8[8192]{0}', space=vmem, size = 0x2000, scoped, tag = 'output window, operand 0, single buffered']
    #allocation6 [shape = 'u8[4096]{0}', space=vmem, size = 0x1000, scoped, tag = 'output window, operand 1, single buffered']
    #allocation7 [shape = 's32[1]{0}', space=sflag, size = 0x4, scoped, tag = 'scoped memory for tpu_custom_call.1']
    %12 = vsyncpa [#allocation3], 0
    %13 = vsyncpa [#allocation4], 0
    %14 = vsyncpa [#allocation7], 0
    // Predicated region
    $region2: #{tpu_custom_call.1} parent=1 // pred_check
      _
    $region3: #{tpu_custom_call.1} parent=1 // pred_check_branch
      %16 = sbr.rel (0) target = $region5
    $region4: #{tpu_custom_call.1} parent=1 // pred_region
      _
    $region5: #{tpu_custom_call.1} parent=1 // pred_fallthru
      _
    // Predicated region
    $region6: #{tpu_custom_call.1} parent=1 // pred_check
      _
    $region7: #{tpu_custom_call.1} parent=1 // pred_check_branch
      %18 = sbr.rel (0) target = $region9
    $region8: #{tpu_custom_call.1} parent=1 // pred_region
      %s20 = ssub.s32 256, 256
      %21 = vsyncadd [#allocation3], %s20
      %s22 = sshll.u32 [#allocation2], 4
      %s23 = int_to_ptr.vmem [resolvable:$true] %s22
      %28 = dma.hbm_to_vmem [thread:$0]  %s1, 256, %s23, [#allocation3], 128, 128, 8
    $region9: #{tpu_custom_call.1} parent=1 // pred_fallthru
      _
    // Predicated region
    $region10: #{tpu_custom_call.1} parent=1 // pred_check
      _
    $region11: #{tpu_custom_call.1} parent=1 // pred_check_branch
      %30 = sbr.rel (0) target = $region13
    $region12: #{tpu_custom_call.1} parent=1 // pred_region
      _
    $region13: #{tpu_custom_call.1} parent=1 // pred_fallthru
      _
    // Predicated region
    $region14: #{tpu_custom_call.1} parent=1 // pred_check
      _
    $region15: #{tpu_custom_call.1} parent=1 // pred_check_branch
      %32 = sbr.rel (0) target = $region17
    $region16: #{tpu_custom_call.1} parent=1 // pred_region
      _
    $region17: #{tpu_custom_call.1} parent=1 // pred_fallthru
      _
    // Predicated region
    $region18: #{tpu_custom_call.1} parent=1 // pred_check
      _
    $region19: #{tpu_custom_call.1} parent=1 // pred_check_branch
      %34 = sbr.rel (0) target = $region21
    $region20: #{tpu_custom_call.1} parent=1 // pred_region
      _
    $region21: #{tpu_custom_call.1} parent=1 // pred_fallthru
      _
    // Predicated region
    $region22: #{tpu_custom_call.1} parent=1 // pred_check
      _
    $region23: #{tpu_custom_call.1} parent=1 // pred_check_branch
      %36 = sbr.rel (0) target = $region25
    $region24: #{tpu_custom_call.1} parent=1 // pred_region
      %37 = dma.done [#allocation3], 256
    $region25: #{tpu_custom_call.1} parent=1 // pred_fallthru
      _
    %v38 = vld [vmem:[%s0] sm:$0xff]
    %v39 = vld [vmem:[%s0 + $0x8] sm:$0xff]
    %v40 = vld [vmem:[%s0 + $0x10] sm:$0xf]
    %v41 = vld [vmem:[#allocation2] sm:$0xff]
    %v42 = vld [vmem:[#allocation2 + $0x8] sm:$0xf]
    %v43 = vld [vmem:[%s2] sm:$0xff]
    %v44 = vld [vmem:[%s2 + $0x8] sm:$0xf]
    %46 = vset.pattern.permute.xlu0 0
    %47 = vperm.xlu0 %46, %v43
    %v48 = vpop.permute.xlu0 %47
    %51 = vset.pattern.permute.xlu0 0
    %52 = vperm.xlu0 %51, %v44
    %v53 = vpop.permute.xlu0 %52
    %vm55 = vcmask 162816
    %v57 = vsel %vm55, %v41, 0
    %v60 = vsel %vm55, %v42, 0
    %vm62 = vcmask 1043456
    %v64 = vsel %vm62, %v40, 0
    %66 = vmatprep.subr.mxu0 0.0
    %67 = vmatpush1.msra.mxu0 %v38
    %68 = vmatprep.subr.mxu0 0.0
    %69 = vmatpush1.msra.mxu0 %v39
    %70 = vmatprep.subr.mxu0 0.0
    %71 = vmatpush1.msra.mxu0 %v64
    %72 = vmatprep.subr.mxu0 0.0
    %73 = vmatpush1.msra.mxu0 0.0
    %74 = vmatprep.subr.mxu0 0.0
    %75 = vmatpush1.msra.mxu0 0.0
    %76 = vmatprep.subr.mxu0 0.0
    %77 = vmatpush1.msra.mxu0 0.0
    %78 = vmatprep.subr.mxu0 0.0
    %79 = vmatpush1.msra.mxu0 0.0
    %80 = vmatprep.subr.mxu0 0.0
    %81 = vmatpush1.msra.mxu0 0.0
    %82 = vmatprep.subr.mxu0 0.0
    %83 = vmatpush1.msra.mxu0 0.0
    %84 = vmatprep.subr.mxu0 0.0
    %85 = vmatpush1.msra.mxu0 0.0
    %86 = vmatprep.subr.mxu0 0.0
    %87 = vmatpush1.msra.mxu0 0.0
    %88 = vmatprep.subr.mxu0 0.0
    %89 = vmatpush1.msra.mxu0 0.0
    %90 = vmatprep.subr.mxu0 0.0
    %91 = vmatpush1.msra.mxu0 0.0
    %92 = vmatprep.subr.mxu0 0.0
    %93 = vmatpush1.msra.mxu0 0.0
    %94 = vmatprep.subr.mxu0 0.0
    %95 = vmatpush1.msra.mxu0 0.0
    %96 = vmatprep.subr.mxu0 0.0
    %97 = vmatpush1.msra.mxu0 0.0
    %98 = vmatprep.subr.mxu0 0.0
    %99 = vmatpush1.msra.mxu0 0.0
    %100 = vmatprep.subr.mxu0 0.0
    %101 = vmatpush1.msra.mxu0 0.0
    %102 = vmatprep.subr.mxu0 0.0
    %103 = vmatpush1.msra.mxu0 0.0
    %104 = vmatprep.subr.mxu0 0.0
    %105 = vmatpush1.msra.mxu0 0.0
    %106 = vmatprep.subr.mxu0 0.0
    %107 = vmatpush1.msra.mxu0 0.0
    %108 = vmatprep.subr.mxu0 0.0
    %109 = vmatpush1.msra.mxu0 0.0
    %110 = vmatprep.subr.mxu0 0.0
    %111 = vmatpush1.msra.mxu0 0.0
    %112 = vmatprep.subr.mxu0 0.0
    %113 = vmatpush1.msra.mxu0 0.0
    %114 = vmatprep.subr.mxu0 0.0
    %115 = vmatpush1.msra.mxu0 0.0
    %116 = vmatprep.subr.mxu0 0.0
    %117 = vmatpush1.msra.mxu0 0.0
    %118 = vmatprep.subr.mxu0 0.0
    %119 = vmatpush1.msra.mxu0 0.0
    %120 = vmatprep.subr.mxu0 0.0
    %121 = vmatpush1.msra.mxu0 0.0
    %122 = vmatprep.subr.mxu0 0.0
    %123 = vmatpush1.msra.mxu0 0.0
    %124 = vmatprep.subr.mxu0 0.0
    %125 = vmatpush1.msra.mxu0 0.0
    %126 = vmatprep.subr.mxu0 0.0
    %127 = vmatpush1.msra.mxu0 0.0
    %128 = vmatprep.subr.mxu0 0.0
    %129 = vmatpush1.msra.mxu0 0.0
    %130 = vmatprep.mubr.f32.mxu0 0.0
    %131 = vmatmul.mubr.f32.gmra.mrb[0].mxu0 %v57
    %v132 = vpop.f32.mrb[0].mxu0
    %v133 = vadd.f32 %v48, %v132
    %v134 = vpop.f32.mrb[0].mxu0
    %135 = vmatprep.mubr.f32.mxu0 0.0
    %136 = vmatmul.mubr.f32.gmra.mrb[0].mxu0 %v60
    %v137 = vpop.f32.mrb[0].mxu0
    %v138 = vadd.f32 %v53, %v137
    %v139 = vpop.f32.mrb[0].mxu0
    %140 = vdwg.mxu0
    %141 = vst [vmem:[#allocation5] sm:$0xff] %v133
    %142 = vst [vmem:[#allocation5 + $0x8] sm:$0xf] %v138
    %v143 = vld [vmem:[%s3] sm:$0xff]
    %v144 = vld [vmem:[%s4] sm:$0xff]
    %146 = vset.pattern.permute.xlu0 0
    %147 = vperm.xlu0 %146, %v144
    %v148 = vpop.permute.xlu0 %147
    %v151 = vsel %vm55, %v143, 0
    %153 = vmatprep.subr.mxu0 0.0
    %154 = vmatpush1.msra.mxu0 %v38
    %155 = vmatprep.subr.mxu0 0.0
    %156 = vmatpush1.msra.mxu0 %v39
    %157 = vmatprep.subr.mxu0 0.0
    %158 = vmatpush1.msra.mxu0 %v64
    %159 = vmatprep.subr.mxu0 0.0
    %160 = vmatpush1.msra.mxu0 0.0
    %161 = vmatprep.subr.mxu0 0.0
    %162 = vmatpush1.msra.mxu0 0.0
    %163 = vmatprep.subr.mxu0 0.0
    %164 = vmatpush1.msra.mxu0 0.0
    %165 = vmatprep.subr.mxu0 0.0
    %166 = vmatpush1.msra.mxu0 0.0
    %167 = vmatprep.subr.mxu0 0.0
    %168 = vmatpush1.msra.mxu0 0.0
    %169 = vmatprep.subr.mxu0 0.0
    %170 = vmatpush1.msra.mxu0 0.0
    %171 = vmatprep.subr.mxu0 0.0
    %172 = vmatpush1.msra.mxu0 0.0
    %173 = vmatprep.subr.mxu0 0.0
    %174 = vmatpush1.msra.mxu0 0.0
    %175 = vmatprep.subr.mxu0 0.0
    %176 = vmatpush1.msra.mxu0 0.0
    %177 = vmatprep.subr.mxu0 0.0
    %178 = vmatpush1.msra.mxu0 0.0
    %179 = vmatprep.subr.mxu0 0.0
    %180 = vmatpush1.msra.mxu0 0.0
    %181 = vmatprep.subr.mxu0 0.0
    %182 = vmatpush1.msra.mxu0 0.0
    %183 = vmatprep.subr.mxu0 0.0
    %184 = vmatpush1.msra.mxu0 0.0
    %185 = vmatprep.subr.mxu0 0.0
    %186 = vmatpush1.msra.mxu0 0.0
    %187 = vmatprep.subr.mxu0 0.0
    %188 = vmatpush1.msra.mxu0 0.0
    %189 = vmatprep.subr.mxu0 0.0
    %190 = vmatpush1.msra.mxu0 0.0
    %191 = vmatprep.subr.mxu0 0.0
    %192 = vmatpush1.msra.mxu0 0.0
    %193 = vmatprep.subr.mxu0 0.0
    %194 = vmatpush1.msra.mxu0 0.0
    %195 = vmatprep.subr.mxu0 0.0
    %196 = vmatpush1.msra.mxu0 0.0
    %197 = vmatprep.subr.mxu0 0.0
    %198 = vmatpush1.msra.mxu0 0.0
    %199 = vmatprep.subr.mxu0 0.0
    %200 = vmatpush1.msra.mxu0 0.0
    %201 = vmatprep.subr.mxu0 0.0
    %202 = vmatpush1.msra.mxu0 0.0
    %203 = vmatprep.subr.mxu0 0.0
    %204 = vmatpush1.msra.mxu0 0.0
    %205 = vmatprep.subr.mxu0 0.0
    %206 = vmatpush1.msra.mxu0 0.0
    %207 = vmatprep.subr.mxu0 0.0
    %208 = vmatpush1.msra.mxu0 0.0
    %209 = vmatprep.subr.mxu0 0.0
    %210 = vmatpush1.msra.mxu0 0.0
    %211 = vmatprep.subr.mxu0 0.0
    %212 = vmatpush1.msra.mxu0 0.0
    %213 = vmatprep.subr.mxu0 0.0
    %214 = vmatpush1.msra.mxu0 0.0
    %215 = vmatprep.subr.mxu0 0.0
    %216 = vmatpush1.msra.mxu0 0.0
    %217 = vmatprep.mubr.f32.mxu0 0.0
    %218 = vmatmul.mubr.f32.gmra.mrb[0].mxu0 %v151
    %v219 = vpop.f32.mrb[0].mxu0
    %v220 = vadd.f32 %v148, %v219
    %v221 = vpop.f32.mrb[0].mxu0
    %222 = vdwg.mxu0
    %223 = vst [vmem:[#allocation6] sm:$0xff] %v220
    // Predicated region
    $region26: #{tpu_custom_call.1} parent=1 // pred_check
      _
    $region27: #{tpu_custom_call.1} parent=1 // pred_check_branch
      %225 = sbr.rel (0) target = $region29
    $region28: #{tpu_custom_call.1} parent=1 // pred_region
      %s227 = ssub.s32 256, 256
      %228 = vsyncadd [#allocation4], %s227
      %s229 = sshll.u32 [#allocation5], 4
      %s230 = int_to_ptr.vmem [resolvable:$true] %s229
      %235 = dma.vmem_to_hbm [thread:$0]  %s230, 256, %s5, [#allocation4], 128, 128, 8
    $region29: #{tpu_custom_call.1} parent=1 // pred_fallthru
      _
    // Predicated region
    $region30: #{tpu_custom_call.1} parent=1 // pred_check
      _
    $region31: #{tpu_custom_call.1} parent=1 // pred_check_branch
      %237 = sbr.rel (0) target = $region33
    $region32: #{tpu_custom_call.1} parent=1 // pred_region
      %s239 = ssub.s32 128, 128
      %240 = vsyncadd [#allocation7], %s239
      %s242 = sshll.u32 [#allocation6], 4
      %s243 = int_to_ptr.vmem [resolvable:$true] %s242
      %245 = dma.vmem_to_hbm [thread:$0]  %s243, 128, %s6, [#allocation7]
    $region33: #{tpu_custom_call.1} parent=1 // pred_fallthru
      _
    // Predicated region
    $region34: #{tpu_custom_call.1} parent=1 // pred_check
      _
    $region35: #{tpu_custom_call.1} parent=1 // pred_check_branch
      %247 = sbr.rel (0) target = $region37
    $region36: #{tpu_custom_call.1} parent=1 // pred_region
      %248 = dma.done [#allocation4], 256
    $region37: #{tpu_custom_call.1} parent=1 // pred_fallthru
      _
    // Predicated region
    $region38: #{tpu_custom_call.1} parent=1 // pred_check
      _
    $region39: #{tpu_custom_call.1} parent=1 // pred_check_branch
      %250 = sbr.rel (0) target = $region41
    $region40: #{tpu_custom_call.1} parent=1 // pred_region
      %251 = dma.done [#allocation7], 128
    $region41: #{tpu_custom_call.1} parent=1 // pred_fallthru
      _
    %252 = vsyncpa [#allocation3], 1
    %253 = vsyncpa [#allocation4], 1
    %254 = vsyncpa [#allocation7], 1

</llo_original>
